<compile_context>
chip_gen: v5e
topology: v5e:2x2
jax: 0.10.0
libtpu: 0.0.40
codegen_flags: <defaults>
</compile_context>

<pallas_src>
import jax
import jax.numpy as jnp
from jax.experimental import pallas as pl
from jax.experimental.pallas import tpu as pltpu


def _group_linear_kernel(x_ref, w_ref, b_ref, o_ref):
    # x_ref: (TM, d)  w_ref: (G, din_g, dout_g)  b_ref: (1, out_dim)
    # o_ref: (TM, out_dim)   with d = G*din_g, out_dim = G*dout_g
    g, din_g, dout_g = w_ref.shape
    pieces = []
    for gi in range(g):  # static unroll; G is small for grouped linears
        xg = x_ref[:, gi * din_g:(gi + 1) * din_g]
        pieces.append(
            jnp.dot(xg, w_ref[gi], preferred_element_type=jnp.float32))
    acc = pieces[0] if g == 1 else jnp.concatenate(pieces, axis=-1)
    # Bias add / epilogue kept in f32 (no bf16 VPU on v5e).
    o_ref[...] = (acc + b_ref[...].astype(jnp.float32)).astype(o_ref.dtype)


def group_linear_ref(x, group_weight, group_bias, groups):
    t, b, d = x.shape
    xg = x.reshape(t, b, groups, d // groups)
    out = jnp.einsum("tbgd,gdf->tbgf", xg, group_weight)
    return out.reshape(t, b, -1) + group_bias


def group_linear(x, group_weight, group_bias, groups, *, tm=None,
                 force_pallas=False):
    """x: (t, b, d); group_weight: (G, d/G, out/G); group_bias: (out,)."""
    t, b, d = x.shape
    g, din_g, dout_g = group_weight.shape
    assert g == groups and d == groups * din_g
    out_dim = groups * dout_g
    M = t * b

    # Sub-tile problems: XLA's fused einsum beats grid-step + DMA overhead.
    if not force_pallas and (M < 256 or out_dim < 128 or d < 128):
        return group_linear_ref(x, group_weight, group_bias, groups)

    x2 = x.reshape(M, d)                        # free (row-major view)
    b2 = group_bias.reshape(1, out_dim)

    itemsize = jnp.dtype(x.dtype).itemsize
    if tm is None:
        # Double-buffered x/out tiles + f32 intermediates under ~20 MiB so the
        # whole kernel fits comfortably inside v7x's 64 MiB VMEM; v5e/v6e have
        # more headroom but the same tile keeps them near the HBM roofline.
        budget = 20 * 1024 * 1024
        per_row = 2 * (d + out_dim) * itemsize + 2 * out_dim * 4
        tm = max(8, min(1024, (budget // per_row) // 8 * 8))
    tm = int(min(tm, max(8, (M + 7) // 8 * 8)))  # don't exceed (padded) M
    m_pad = pl.cdiv(M, tm) * tm
    if m_pad != M:
        x2 = jnp.pad(x2, ((0, m_pad - M), (0, 0)))

    # Raise the scoped VMEM limit above the per-generation defaults.
    est = ((2 * tm * (d + out_dim) + 2 * g * din_g * dout_g + 2 * out_dim)
           * itemsize + 2 * tm * out_dim * 4)
    vmem_limit = int(min(112 * 1024 * 1024, est + 16 * 1024 * 1024))

    out = pl.pallas_call(
        _group_linear_kernel,
        out_shape=jax.ShapeDtypeStruct((m_pad, out_dim), x.dtype),
        grid=(m_pad // tm,),
        in_specs=[
            pl.BlockSpec((tm, d), lambda mi: (mi, 0)),
            # Constant block index -> weight/bias fetched once, VMEM-resident.
            pl.BlockSpec((g, din_g, dout_g), lambda mi: (0, 0, 0)),
            pl.BlockSpec((1, out_dim), lambda mi: (0, 0)),
        ],
        out_specs=pl.BlockSpec((tm, out_dim), lambda mi: (mi, 0)),
        compiler_params=pltpu.CompilerParams(
            dimension_semantics=("parallel",),
            vmem_limit_bytes=vmem_limit,
        ),
    )(x2, group_weight, b2)

    if m_pad != M:
        out = out[:M]
    return out.reshape(t, b, out_dim)


if __name__ == "__main__":
    key = jax.random.PRNGKey(0)
    k1, k2, k3, k4, k5, k6 = jax.random.split(key, 6)

    # Use full-precision matmuls for the numerical check (applies to both the
    # in-kernel jnp.dot and the einsum reference at trace time).
    with jax.default_matmul_precision("highest"):
        # --- Test 1: tiny shapes from the module's toy usage; force the
        # Pallas path so the kernel itself is exercised even below the
        # size-heuristic threshold.
        t, b = 8, 2
        in_planes, out_channels, groups = 32, 16, 4
        x = jax.random.normal(k1, (t, b, in_planes), dtype=jnp.float32)
        w = jax.random.normal(
            k2, (groups, in_planes // groups, out_channels // groups),
            dtype=jnp.float32) * 0.1
        bias = jax.random.normal(k3, (out_channels,), dtype=jnp.float32) * 0.1

        out = group_linear(x, w, bias, groups, force_pallas=True)
        out = jax.block_until_ready(out)
        ref = group_linear_ref(x, w, bias, groups)
        assert out.shape == (t, b, out_channels)
        assert jnp.allclose(out, ref, atol=1e-4, rtol=1e-4)

        # --- Test 2: larger shape exercising row tiling, ragged-M padding,
        # weight residency across grid steps, and the lane-dense output path.
        t, b = 37, 9                     # M = 333 (not a multiple of TM)
        in_planes, out_channels, groups = 256, 256, 4
        x = jax.random.normal(k4, (t, b, in_planes), dtype=jnp.float32)
        w = jax.random.normal(
            k5, (groups, in_planes // groups, out_channels // groups),
            dtype=jnp.float32) * 0.1
        bias = jax.random.normal(k6, (out_channels,), dtype=jnp.float32) * 0.1

        out2 = group_linear(x, w, bias, groups, tm=128)
        out2 = jax.block_until_ready(out2)
        ref2 = group_linear_ref(x, w, bias, groups)
        assert out2.shape == (t, b, out_channels)
        assert jnp.allclose(out2, ref2, atol=1e-4, rtol=1e-4)

    print("KERNEL_OK")
</pallas_src>

<mosaic_0001>
module attributes {stable_mosaic.version = 11 : i64} {
  func.func @_group_linear_kernel(%arg0: i32, %arg1: memref<16x32xf32, #tpu.memory_space<vmem>>, %arg2: memref<4x8x4xf32, #tpu.memory_space<vmem>>, %arg3: memref<1x16xf32, #tpu.memory_space<vmem>>, %arg4: memref<16x16xf32, #tpu.memory_space<vmem>>) attributes {dimension_semantics = [#tpu.dimension_semantics<parallel>], iteration_bounds = array<i64: 1>, scalar_prefetch = 0 : i64, scratch_operands = 0 : i64, tpu.core_type = #tpu.core_type<tc>, window_params = [{transform_indices = @transform_0, window_bounds = array<i64: 16, 32>}, {pipeline_mode = #tpu.pipeline_mode<synchronous>, transform_indices = @transform_1, window_bounds = array<i64: 4, 8, 4>}, {pipeline_mode = #tpu.pipeline_mode<synchronous>, transform_indices = @transform_2, window_bounds = array<i64: 1, 16>}, {transform_indices = @transform_3, window_bounds = array<i64: 16, 16>}]} {
    %c0 = arith.constant 0 : index
    %c0_0 = arith.constant 0 : index
    %0 = vector.load %arg1[%c0, %c0_0] : memref<16x32xf32, #tpu.memory_space<vmem>>, vector<16x8xf32>
    %c0_1 = arith.constant 0 : index
    %c0_2 = arith.constant 0 : index
    %c0_3 = arith.constant 0 : index
    %1 = vector.load %arg2[%c0_1, %c0_2, %c0_3] : memref<4x8x4xf32, #tpu.memory_space<vmem>>, vector<1x8x4xf32>
    %2 = vector.shape_cast %1 : vector<1x8x4xf32> to vector<8x4xf32>
    %cst = arith.constant dense<0.000000e+00> : vector<16x4xf32>
    %3 = tpu.matmul %0, %2, %cst {dimension_numbers = #tpu.dot_dimension_numbers<[1], [0], [0], [1], [0, 0, 1, 1], [], []>, precision = #tpu.contract_precision<fp32>} : vector<16x8xf32>, vector<8x4xf32>, vector<16x4xf32> -> vector<16x4xf32>
    %c0_4 = arith.constant 0 : index
    %c8 = arith.constant 8 : index
    %4 = vector.load %arg1[%c0_4, %c8] : memref<16x32xf32, #tpu.memory_space<vmem>>, vector<16x8xf32>
    %c1 = arith.constant 1 : index
    %c0_5 = arith.constant 0 : index
    %c0_6 = arith.constant 0 : index
    %5 = vector.load %arg2[%c1, %c0_5, %c0_6] : memref<4x8x4xf32, #tpu.memory_space<vmem>>, vector<1x8x4xf32>
    %6 = vector.shape_cast %5 : vector<1x8x4xf32> to vector<8x4xf32>
    %cst_7 = arith.constant dense<0.000000e+00> : vector<16x4xf32>
    %7 = tpu.matmul %4, %6, %cst_7 {dimension_numbers = #tpu.dot_dimension_numbers<[1], [0], [0], [1], [0, 0, 1, 1], [], []>, precision = #tpu.contract_precision<fp32>} : vector<16x8xf32>, vector<8x4xf32>, vector<16x4xf32> -> vector<16x4xf32>
    %c0_8 = arith.constant 0 : index
    %c16 = arith.constant 16 : index
    %8 = vector.load %arg1[%c0_8, %c16] : memref<16x32xf32, #tpu.memory_space<vmem>>, vector<16x8xf32>
    %c2 = arith.constant 2 : index
    %c0_9 = arith.constant 0 : index
    %c0_10 = arith.constant 0 : index
    %9 = vector.load %arg2[%c2, %c0_9, %c0_10] : memref<4x8x4xf32, #tpu.memory_space<vmem>>, vector<1x8x4xf32>
    %10 = vector.shape_cast %9 : vector<1x8x4xf32> to vector<8x4xf32>
    %cst_11 = arith.constant dense<0.000000e+00> : vector<16x4xf32>
    %11 = tpu.matmul %8, %10, %cst_11 {dimension_numbers = #tpu.dot_dimension_numbers<[1], [0], [0], [1], [0, 0, 1, 1], [], []>, precision = #tpu.contract_precision<fp32>} : vector<16x8xf32>, vector<8x4xf32>, vector<16x4xf32> -> vector<16x4xf32>
    %c0_12 = arith.constant 0 : index
    %c24 = arith.constant 24 : index
    %12 = vector.load %arg1[%c0_12, %c24] : memref<16x32xf32, #tpu.memory_space<vmem>>, vector<16x8xf32>
    %c3 = arith.constant 3 : index
    %c0_13 = arith.constant 0 : index
    %c0_14 = arith.constant 0 : index
    %13 = vector.load %arg2[%c3, %c0_13, %c0_14] : memref<4x8x4xf32, #tpu.memory_space<vmem>>, vector<1x8x4xf32>
    %14 = vector.shape_cast %13 : vector<1x8x4xf32> to vector<8x4xf32>
    %cst_15 = arith.constant dense<0.000000e+00> : vector<16x4xf32>
    %15 = tpu.matmul %12, %14, %cst_15 {dimension_numbers = #tpu.dot_dimension_numbers<[1], [0], [0], [1], [0, 0, 1, 1], [], []>, precision = #tpu.contract_precision<fp32>} : vector<16x8xf32>, vector<8x4xf32>, vector<16x4xf32> -> vector<16x4xf32>
    %16 = tpu.concatenate %3, %7, %11, %15 in 1 : vector<16x4xf32>, vector<16x4xf32>, vector<16x4xf32>, vector<16x4xf32> -> vector<16x16xf32>
    %c0_16 = arith.constant 0 : index
    %c0_17 = arith.constant 0 : index
    %17 = vector.load %arg3[%c0_16, %c0_17] : memref<1x16xf32, #tpu.memory_space<vmem>>, vector<1x16xf32>
    %18 = vector.broadcast %17 : vector<1x16xf32> to vector<16x16xf32>
    %19 = arith.addf %16, %18 : vector<16x16xf32>
    %c0_18 = arith.constant 0 : index
    %c0_19 = arith.constant 0 : index
    %20 = vector.load %arg4[%c0_18, %c0_19] : memref<16x16xf32, #tpu.memory_space<vmem>>, vector<16x16xf32>
    tpu.vector_store %arg4[%c0_18, %c0_19], %19 {strides = array<i32>} : memref<16x16xf32, #tpu.memory_space<vmem>>, vector<16x16xf32>,
    return
  }
  func.func @transform_0(%arg0: i32) -> (i32, i32) {
    %c0_i32 = arith.constant 0 : i32
    %c0_i32_0 = arith.constant 0 : i32
    return %arg0, %c0_i32 : i32, i32
  }
  func.func @transform_1(%arg0: i32) -> (i32, i32, i32) {
    %c0_i32 = arith.constant 0 : i32
    %c0_i32_0 = arith.constant 0 : i32
    %c0_i32_1 = arith.constant 0 : i32
    %c0_i32_2 = arith.constant 0 : i32
    return %c0_i32, %c0_i32_0, %c0_i32_1 : i32, i32, i32
  }
  func.func @transform_2(%arg0: i32) -> (i32, i32) {
    %c0_i32 = arith.constant 0 : i32
    %c0_i32_0 = arith.constant 0 : i32
    %c0_i32_1 = arith.constant 0 : i32
    return %c0_i32, %c0_i32_0 : i32, i32
  }
  func.func @transform_3(%arg0: i32) -> (i32, i32) {
    %c0_i32 = arith.constant 0 : i32
    %c0_i32_0 = arith.constant 0 : i32
    return %arg0, %c0_i32 : i32, i32
  }
}

</mosaic_0001>

<llo_original>
// kernel: tpu_custom_call.1
$region0: #{tpu_custom_call.1}
  #allocation0 [shape = 'u32[]', space=smem, size = 0x4, offset = 0x4, fixed_abs, tag = 'smem constant byte address 0x4 - core index']
  #allocation1 [shape = 'u32[72,128]{1,0:T(1,128)}', space=vmem, size = 0x9000, scoped, tag = 'internal scratch']
  %s0 = inlined_call_operand.vmem [shape: f32[16,32], index: 0, kind: input, shape index: {}]
  %s1 = inlined_call_operand.vmem [shape: f32[4,8,4], index: 1, kind: input, shape index: {}]
  %s2 = inlined_call_operand.vmem [shape: f32[1,16], index: 2, kind: input, shape index: {}]
  %s3 = inlined_call_operand.hbm [shape: f32[16,16], index: 3, kind: output, shape index: {}]
  %s4 = sld [smem:[#allocation0]]
  $region22: #{tpu_custom_call.1} parent=0
    _
  %s6 = ssub.s32 1, %s4
  %s7 = scalar_select 0, %s6, %s4
  $region1: #{tpu_custom_call.1} parent=0
    #allocation2 [shape = 'u8[8192]{0}', space=vmem, size = 0x2000, scoped, tag = 'output window, operand 0, single buffered']
    #allocation3 [shape = 's32[1]{0}', space=sflag, size = 0x4, scoped, tag = 'scoped memory for tpu_custom_call.1']
    %8 = vsyncpa [#allocation3], 0
    // Predicated region
    $region2: #{tpu_custom_call.1} parent=1 // pred_check
      _
    $region3: #{tpu_custom_call.1} parent=1 // pred_check_branch
      %10 = sbr.rel (0) target = $region5
    $region4: #{tpu_custom_call.1} parent=1 // pred_region
      _
    $region5: #{tpu_custom_call.1} parent=1 // pred_fallthru
      _
    // Predicated region
    $region6: #{tpu_custom_call.1} parent=1 // pred_check
      _
    $region7: #{tpu_custom_call.1} parent=1 // pred_check_branch
      %12 = sbr.rel (0) target = $region9
    $region8: #{tpu_custom_call.1} parent=1 // pred_region
      _
    $region9: #{tpu_custom_call.1} parent=1 // pred_fallthru
      _
    // Predicated region
    $region10: #{tpu_custom_call.1} parent=1 // pred_check
      _
    $region11: #{tpu_custom_call.1} parent=1 // pred_check_branch
      %14 = sbr.rel (0) target = $region13
    $region12: #{tpu_custom_call.1} parent=1 // pred_region
      _
    $region13: #{tpu_custom_call.1} parent=1 // pred_fallthru
      _
    %v15 = vld [vmem:[%s0] sm:$0xff]
    %v16 = vld [vmem:[%s0 + $0x8] sm:$0xff]
    %v17 = vld [vmem:[%s1] sm:$0xff]
    %vm18 = vcmask 64512
    %v20 = vsel %vm18, %v15, 0
    %v23 = vsel %vm18, %v16, 0
    %25 = vmatpush.msra.mxu0 0.0
    %26 = vmatpush.msra.mxu0 0.0
    %27 = vmatpush.msra.mxu0 0.0
    %28 = vmatpush.msra.mxu0 0.0
    %29 = vmatpush.msra.mxu0 0.0
    %30 = vmatpush.msra.mxu0 0.0
    %31 = vmatpush.msra.mxu0 0.0
    %32 = vmatpush.msra.mxu0 0.0
    %33 = vmatpush.msra.mxu0 0.0
    %34 = vmatpush.msra.mxu0 0.0
    %35 = vmatpush.msra.mxu0 0.0
    %36 = vmatpush.msra.mxu0 0.0
    %37 = vmatpush.msra.mxu0 0.0
    %38 = vmatpush.msra.mxu0 0.0
    %39 = vmatpush.msra.mxu0 0.0
    %v40 = vand.u32 %v17, 4294901760
    %41 = vmatpush.msra.mxu0 %v40
    %v42 = vand.u32 %v20, 4294901760
    %v43 = vsub.f32 %v20, %v42
    %v44 = vand.u32 %v43, 4294901760
    %v45 = vsub.f32 %v43, %v44
    %v46 = vand.u32 %v45, 4294901760
    %47 = vmatmul.f32.gmra.mxu0 %v46
    %v48 = vpop.f32.mrf.mxu0
    %v49 = vadd.f32 0.0, %v48
    %v50 = vand.u32 %v23, 4294901760
    %v51 = vsub.f32 %v23, %v50
    %v52 = vand.u32 %v51, 4294901760
    %v53 = vsub.f32 %v51, %v52
    %v54 = vand.u32 %v53, 4294901760
    %55 = vmatmul.f32.gmra.mxu0 %v54
    %v56 = vpop.f32.mrf.mxu0
    %v57 = vadd.f32 0.0, %v56
    %58 = vdwg.mxu0
    %59 = vmatpush.msra.mxu0 0.0
    %60 = vmatpush.msra.mxu0 0.0
    %61 = vmatpush.msra.mxu0 0.0
    %62 = vmatpush.msra.mxu0 0.0
    %63 = vmatpush.msra.mxu0 0.0
    %64 = vmatpush.msra.mxu0 0.0
    %65 = vmatpush.msra.mxu0 0.0
    %66 = vmatpush.msra.mxu0 0.0
    %67 = vmatpush.msra.mxu0 0.0
    %68 = vmatpush.msra.mxu0 0.0
    %69 = vmatpush.msra.mxu0 0.0
    %70 = vmatpush.msra.mxu0 0.0
    %71 = vmatpush.msra.mxu0 0.0
    %72 = vmatpush.msra.mxu0 0.0
    %73 = vmatpush.msra.mxu0 0.0
    %v74 = vand.u32 %v17, 4294901760
    %v75 = vsub.f32 %v17, %v74
    %v76 = vand.u32 %v75, 4294901760
    %v77 = vsub.f32 %v75, %v76
    %v78 = vand.u32 %v77, 4294901760
    %79 = vmatpush.msra.mxu0 %v78
    %v80 = vand.u32 %v20, 4294901760
    %81 = vmatmul.f32.gmra.mxu0 %v80
    %v82 = vpop.f32.mrf.mxu0
    %v83 = vadd.f32 %v49, %v82
    %v84 = vand.u32 %v23, 4294901760
    %85 = vmatmul.f32.gmra.mxu0 %v84
    %v86 = vpop.f32.mrf.mxu0
    %v87 = vadd.f32 %v57, %v86
    %88 = vdwg.mxu0
    %89 = vmatpush.msra.mxu0 0.0
    %90 = vmatpush.msra.mxu0 0.0
    %91 = vmatpush.msra.mxu0 0.0
    %92 = vmatpush.msra.mxu0 0.0
    %93 = vmatpush.msra.mxu0 0.0
    %94 = vmatpush.msra.mxu0 0.0
    %95 = vmatpush.msra.mxu0 0.0
    %96 = vmatpush.msra.mxu0 0.0
    %97 = vmatpush.msra.mxu0 0.0
    %98 = vmatpush.msra.mxu0 0.0
    %99 = vmatpush.msra.mxu0 0.0
    %100 = vmatpush.msra.mxu0 0.0
    %101 = vmatpush.msra.mxu0 0.0
    %102 = vmatpush.msra.mxu0 0.0
    %103 = vmatpush.msra.mxu0 0.0
    %v104 = vand.u32 %v17, 4294901760
    %v105 = vsub.f32 %v17, %v104
    %106 = vmatpush.msra.mxu0 %v105
    %v107 = vand.u32 %v20, 4294901760
    %v108 = vsub.f32 %v20, %v107
    %109 = vmatmul.f32.gmra.mxu0 %v108
    %v110 = vpop.f32.mrf.mxu0
    %v111 = vadd.f32 %v83, %v110
    %v112 = vand.u32 %v23, 4294901760
    %v113 = vsub.f32 %v23, %v112
    %114 = vmatmul.f32.gmra.mxu0 %v113
    %v115 = vpop.f32.mrf.mxu0
    %v116 = vadd.f32 %v87, %v115
    %117 = vdwg.mxu0
    %118 = vmatpush.msra.mxu0 0.0
    %119 = vmatpush.msra.mxu0 0.0
    %120 = vmatpush.msra.mxu0 0.0
    %121 = vmatpush.msra.mxu0 0.0
    %122 = vmatpush.msra.mxu0 0.0
    %123 = vmatpush.msra.mxu0 0.0
    %124 = vmatpush.msra.mxu0 0.0
    %125 = vmatpush.msra.mxu0 0.0
    %126 = vmatpush.msra.mxu0 0.0
    %127 = vmatpush.msra.mxu0 0.0
    %128 = vmatpush.msra.mxu0 0.0
    %129 = vmatpush.msra.mxu0 0.0
    %130 = vmatpush.msra.mxu0 0.0
    %131 = vmatpush.msra.mxu0 0.0
    %132 = vmatpush.msra.mxu0 0.0
    %v133 = vand.u32 %v17, 4294901760
    %134 = vmatpush.msra.mxu0 %v133
    %v135 = vand.u32 %v20, 4294901760
    %v136 = vsub.f32 %v20, %v135
    %v137 = vand.u32 %v136, 4294901760
    %138 = vmatmul.f32.gmra.mxu0 %v137
    %v139 = vpop.f32.mrf.mxu0
    %v140 = vadd.f32 %v111, %v139
    %v141 = vand.u32 %v23, 4294901760
    %v142 = vsub.f32 %v23, %v141
    %v143 = vand.u32 %v142, 4294901760
    %144 = vmatmul.f32.gmra.mxu0 %v143
    %v145 = vpop.f32.mrf.mxu0
    %v146 = vadd.f32 %v116, %v145
    %147 = vdwg.mxu0
    %148 = vmatpush.msra.mxu0 0.0
    %149 = vmatpush.msra.mxu0 0.0
    %150 = vmatpush.msra.mxu0 0.0
    %151 = vmatpush.msra.mxu0 0.0
    %152 = vmatpush.msra.mxu0 0.0
    %153 = vmatpush.msra.mxu0 0.0
    %154 = vmatpush.msra.mxu0 0.0
    %155 = vmatpush.msra.mxu0 0.0
    %156 = vmatpush.msra.mxu0 0.0
    %157 = vmatpush.msra.mxu0 0.0
    %158 = vmatpush.msra.mxu0 0.0
    %159 = vmatpush.msra.mxu0 0.0
    %160 = vmatpush.msra.mxu0 0.0
    %161 = vmatpush.msra.mxu0 0.0
    %162 = vmatpush.msra.mxu0 0.0
    %v163 = vand.u32 %v17, 4294901760
    %v164 = vsub.f32 %v17, %v163
    %v165 = vand.u32 %v164, 4294901760
    %166 = vmatpush.msra.mxu0 %v165
    %v167 = vand.u32 %v20, 4294901760
    %168 = vmatmul.f32.gmra.mxu0 %v167
    %v169 = vpop.f32.mrf.mxu0
    %v170 = vadd.f32 %v140, %v169
    %v171 = vand.u32 %v23, 4294901760
    %172 = vmatmul.f32.gmra.mxu0 %v171
    %v173 = vpop.f32.mrf.mxu0
    %v174 = vadd.f32 %v146, %v173
    %175 = vdwg.mxu0
    %176 = vmatpush.msra.mxu0 0.0
    %177 = vmatpush.msra.mxu0 0.0
    %178 = vmatpush.msra.mxu0 0.0
    %179 = vmatpush.msra.mxu0 0.0
    %180 = vmatpush.msra.mxu0 0.0
    %181 = vmatpush.msra.mxu0 0.0
    %182 = vmatpush.msra.mxu0 0.0
    %183 = vmatpush.msra.mxu0 0.0
    %184 = vmatpush.msra.mxu0 0.0
    %185 = vmatpush.msra.mxu0 0.0
    %186 = vmatpush.msra.mxu0 0.0
    %187 = vmatpush.msra.mxu0 0.0
    %188 = vmatpush.msra.mxu0 0.0
    %189 = vmatpush.msra.mxu0 0.0
    %190 = vmatpush.msra.mxu0 0.0
    %v191 = vand.u32 %v17, 4294901760
    %192 = vmatpush.msra.mxu0 %v191
    %v193 = vand.u32 %v20, 4294901760
    %194 = vmatmul.f32.gmra.mxu0 %v193
    %v195 = vpop.f32.mrf.mxu0
    %v196 = vadd.f32 %v170, %v195
    %v197 = vand.u32 %v23, 4294901760
    %198 = vmatmul.f32.gmra.mxu0 %v197
    %v199 = vpop.f32.mrf.mxu0
    %v200 = vadd.f32 %v174, %v199
    %201 = vdwg.mxu0
    %s202 = scalar_lea.vmem %s1, 8
    %v203 = vld [vmem:[%s202] sm:$0xff]
    %204 = vrot.lane.b32.xlu0 %v15, 120
    %v205 = vpop.permute.xlu0 %204
    %206 = vrot.lane.b32.xlu0 %v16, 120
    %v207 = vpop.permute.xlu0 %206
    %v208 = vsel %vm18, %v205, 0
    %v210 = vsel %vm18, %v207, 0
    %212 = vmatpush.msra.mxu0 0.0
    %213 = vmatpush.msra.mxu0 0.0
    %214 = vmatpush.msra.mxu0 0.0
    %215 = vmatpush.msra.mxu0 0.0
    %216 = vmatpush.msra.mxu0 0.0
    %217 = vmatpush.msra.mxu0 0.0
    %218 = vmatpush.msra.mxu0 0.0
    %219 = vmatpush.msra.mxu0 0.0
    %220 = vmatpush.msra.mxu0 0.0
    %221 = vmatpush.msra.mxu0 0.0
    %222 = vmatpush.msra.mxu0 0.0
    %223 = vmatpush.msra.mxu0 0.0
    %224 = vmatpush.msra.mxu0 0.0
    %225 = vmatpush.msra.mxu0 0.0
    %226 = vmatpush.msra.mxu0 0.0
    %v227 = vand.u32 %v203, 4294901760
    %228 = vmatpush.msra.mxu0 %v227
    %v229 = vand.u32 %v208, 4294901760
    %v230 = vsub.f32 %v208, %v229
    %v231 = vand.u32 %v230, 4294901760
    %v232 = vsub.f32 %v230, %v231
    %v233 = vand.u32 %v232, 4294901760
    %234 = vmatmul.f32.gmra.mxu0 %v233
    %v235 = vpop.f32.mrf.mxu0
    %v236 = vadd.f32 0.0, %v235
    %v237 = vand.u32 %v210, 4294901760
    %v238 = vsub.f32 %v210, %v237
    %v239 = vand.u32 %v238, 4294901760
    %v240 = vsub.f32 %v238, %v239
    %v241 = vand.u32 %v240, 4294901760
    %242 = vmatmul.f32.gmra.mxu0 %v241
    %v243 = vpop.f32.mrf.mxu0
    %v244 = vadd.f32 0.0, %v243
    %245 = vdwg.mxu0
    %246 = vmatpush.msra.mxu0 0.0
    %247 = vmatpush.msra.mxu0 0.0
    %248 = vmatpush.msra.mxu0 0.0
    %249 = vmatpush.msra.mxu0 0.0
    %250 = vmatpush.msra.mxu0 0.0
    %251 = vmatpush.msra.mxu0 0.0
    %252 = vmatpush.msra.mxu0 0.0
    %253 = vmatpush.msra.mxu0 0.0
    %254 = vmatpush.msra.mxu0 0.0
    %255 = vmatpush.msra.mxu0 0.0
    %256 = vmatpush.msra.mxu0 0.0
    %257 = vmatpush.msra.mxu0 0.0
    %258 = vmatpush.msra.mxu0 0.0
    %259 = vmatpush.msra.mxu0 0.0
    %260 = vmatpush.msra.mxu0 0.0
    %v261 = vand.u32 %v203, 4294901760
    %v262 = vsub.f32 %v203, %v261
    %v263 = vand.u32 %v262, 4294901760
    %v264 = vsub.f32 %v262, %v263
    %v265 = vand.u32 %v264, 4294901760
    %266 = vmatpush.msra.mxu0 %v265
    %v267 = vand.u32 %v208, 4294901760
    %268 = vmatmul.f32.gmra.mxu0 %v267
    %v269 = vpop.f32.mrf.mxu0
    %v270 = vadd.f32 %v236, %v269
    %v271 = vand.u32 %v210, 4294901760
    %272 = vmatmul.f32.gmra.mxu0 %v271
    %v273 = vpop.f32.mrf.mxu0
    %v274 = vadd.f32 %v244, %v273
    %275 = vdwg.mxu0
    %276 = vmatpush.msra.mxu0 0.0
    %277 = vmatpush.msra.mxu0 0.0
    %278 = vmatpush.msra.mxu0 0.0
    %279 = vmatpush.msra.mxu0 0.0
    %280 = vmatpush.msra.mxu0 0.0
    %281 = vmatpush.msra.mxu0 0.0
    %282 = vmatpush.msra.mxu0 0.0
    %283 = vmatpush.msra.mxu0 0.0
    %284 = vmatpush.msra.mxu0 0.0
    %285 = vmatpush.msra.mxu0 0.0
    %286 = vmatpush.msra.mxu0 0.0
    %287 = vmatpush.msra.mxu0 0.0
    %288 = vmatpush.msra.mxu0 0.0
    %289 = vmatpush.msra.mxu0 0.0
    %290 = vmatpush.msra.mxu0 0.0
    %v291 = vand.u32 %v203, 4294901760
    %v292 = vsub.f32 %v203, %v291
    %293 = vmatpush.msra.mxu0 %v292
    %v294 = vand.u32 %v208, 4294901760
    %v295 = vsub.f32 %v208, %v294
    %296 = vmatmul.f32.gmra.mxu0 %v295
    %v297 = vpop.f32.mrf.mxu0
    %v298 = vadd.f32 %v270, %v297
    %v299 = vand.u32 %v210, 4294901760
    %v300 = vsub.f32 %v210, %v299
    %301 = vmatmul.f32.gmra.mxu0 %v300
    %v302 = vpop.f32.mrf.mxu0
    %v303 = vadd.f32 %v274, %v302
    %304 = vdwg.mxu0
    %305 = vmatpush.msra.mxu0 0.0
    %306 = vmatpush.msra.mxu0 0.0
    %307 = vmatpush.msra.mxu0 0.0
    %308 = vmatpush.msra.mxu0 0.0
    %309 = vmatpush.msra.mxu0 0.0
    %310 = vmatpush.msra.mxu0 0.0
    %311 = vmatpush.msra.mxu0 0.0
    %312 = vmatpush.msra.mxu0 0.0
    %313 = vmatpush.msra.mxu0 0.0
    %314 = vmatpush.msra.mxu0 0.0
    %315 = vmatpush.msra.mxu0 0.0
    %316 = vmatpush.msra.mxu0 0.0
    %317 = vmatpush.msra.mxu0 0.0
    %318 = vmatpush.msra.mxu0 0.0
    %319 = vmatpush.msra.mxu0 0.0
    %v320 = vand.u32 %v203, 4294901760
    %321 = vmatpush.msra.mxu0 %v320
    %v322 = vand.u32 %v208, 4294901760
    %v323 = vsub.f32 %v208, %v322
    %v324 = vand.u32 %v323, 4294901760
    %325 = vmatmul.f32.gmra.mxu0 %v324
    %v326 = vpop.f32.mrf.mxu0
    %v327 = vadd.f32 %v298, %v326
    %v328 = vand.u32 %v210, 4294901760
    %v329 = vsub.f32 %v210, %v328
    %v330 = vand.u32 %v329, 4294901760
    %331 = vmatmul.f32.gmra.mxu0 %v330
    %v332 = vpop.f32.mrf.mxu0
    %v333 = vadd.f32 %v303, %v332
    %334 = vdwg.mxu0
    %335 = vmatpush.msra.mxu0 0.0
    %336 = vmatpush.msra.mxu0 0.0
    %337 = vmatpush.msra.mxu0 0.0
    %338 = vmatpush.msra.mxu0 0.0
    %339 = vmatpush.msra.mxu0 0.0
    %340 = vmatpush.msra.mxu0 0.0
    %341 = vmatpush.msra.mxu0 0.0
    %342 = vmatpush.msra.mxu0 0.0
    %343 = vmatpush.msra.mxu0 0.0
    %344 = vmatpush.msra.mxu0 0.0
    %345 = vmatpush.msra.mxu0 0.0
    %346 = vmatpush.msra.mxu0 0.0
    %347 = vmatpush.msra.mxu0 0.0
    %348 = vmatpush.msra.mxu0 0.0
    %349 = vmatpush.msra.mxu0 0.0
    %v350 = vand.u32 %v203, 4294901760
    %v351 = vsub.f32 %v203, %v350
    %v352 = vand.u32 %v351, 4294901760
    %353 = vmatpush.msra.mxu0 %v352
    %v354 = vand.u32 %v208, 4294901760
    %355 = vmatmul.f32.gmra.mxu0 %v354
    %v356 = vpop.f32.mrf.mxu0
    %v357 = vadd.f32 %v327, %v356
    %v358 = vand.u32 %v210, 4294901760
    %359 = vmatmul.f32.gmra.mxu0 %v358
    %v360 = vpop.f32.mrf.mxu0
    %v361 = vadd.f32 %v333, %v360
    %362 = vdwg.mxu0
    %363 = vmatpush.msra.mxu0 0.0
    %364 = vmatpush.msra.mxu0 0.0
    %365 = vmatpush.msra.mxu0 0.0
    %366 = vmatpush.msra.mxu0 0.0
    %367 = vmatpush.msra.mxu0 0.0
    %368 = vmatpush.msra.mxu0 0.0
    %369 = vmatpush.msra.mxu0 0.0
    %370 = vmatpush.msra.mxu0 0.0
    %371 = vmatpush.msra.mxu0 0.0
    %372 = vmatpush.msra.mxu0 0.0
    %373 = vmatpush.msra.mxu0 0.0
    %374 = vmatpush.msra.mxu0 0.0
    %375 = vmatpush.msra.mxu0 0.0
    %376 = vmatpush.msra.mxu0 0.0
    %377 = vmatpush.msra.mxu0 0.0
    %v378 = vand.u32 %v203, 4294901760
    %379 = vmatpush.msra.mxu0 %v378
    %v380 = vand.u32 %v208, 4294901760
    %381 = vmatmul.f32.gmra.mxu0 %v380
    %v382 = vpop.f32.mrf.mxu0
    %v383 = vadd.f32 %v357, %v382
    %v384 = vand.u32 %v210, 4294901760
    %385 = vmatmul.f32.gmra.mxu0 %v384
    %v386 = vpop.f32.mrf.mxu0
    %v387 = vadd.f32 %v361, %v386
    %388 = vdwg.mxu0
    %s389 = scalar_lea.vmem %s1, 16
    %v390 = vld [vmem:[%s389] sm:$0xff]
    %391 = vrot.lane.b32.xlu0 %v15, 112
    %v392 = vpop.permute.xlu0 %391
    %393 = vrot.lane.b32.xlu0 %v16, 112
    %v394 = vpop.permute.xlu0 %393
    %v395 = vsel %vm18, %v392, 0
    %v397 = vsel %vm18, %v394, 0
    %399 = vmatpush.msra.mxu0 0.0
    %400 = vmatpush.msra.mxu0 0.0
    %401 = vmatpush.msra.mxu0 0.0
    %402 = vmatpush.msra.mxu0 0.0
    %403 = vmatpush.msra.mxu0 0.0
    %404 = vmatpush.msra.mxu0 0.0
    %405 = vmatpush.msra.mxu0 0.0
    %406 = vmatpush.msra.mxu0 0.0
    %407 = vmatpush.msra.mxu0 0.0
    %408 = vmatpush.msra.mxu0 0.0
    %409 = vmatpush.msra.mxu0 0.0
    %410 = vmatpush.msra.mxu0 0.0
    %411 = vmatpush.msra.mxu0 0.0
    %412 = vmatpush.msra.mxu0 0.0
    %413 = vmatpush.msra.mxu0 0.0
    %v414 = vand.u32 %v390, 4294901760
    %415 = vmatpush.msra.mxu0 %v414
    %v416 = vand.u32 %v395, 4294901760
    %v417 = vsub.f32 %v395, %v416
    %v418 = vand.u32 %v417, 4294901760
    %v419 = vsub.f32 %v417, %v418
    %v420 = vand.u32 %v419, 4294901760
    %421 = vmatmul.f32.gmra.mxu0 %v420
    %v422 = vpop.f32.mrf.mxu0
    %v423 = vadd.f32 0.0, %v422
    %v424 = vand.u32 %v397, 4294901760
    %v425 = vsub.f32 %v397, %v424
    %v426 = vand.u32 %v425, 4294901760
    %v427 = vsub.f32 %v425, %v426
    %v428 = vand.u32 %v427, 4294901760
    %429 = vmatmul.f32.gmra.mxu0 %v428
    %v430 = vpop.f32.mrf.mxu0
    %v431 = vadd.f32 0.0, %v430
    %432 = vdwg.mxu0
    %433 = vmatpush.msra.mxu0 0.0
    %434 = vmatpush.msra.mxu0 0.0
    %435 = vmatpush.msra.mxu0 0.0
    %436 = vmatpush.msra.mxu0 0.0
    %437 = vmatpush.msra.mxu0 0.0
    %438 = vmatpush.msra.mxu0 0.0
    %439 = vmatpush.msra.mxu0 0.0
    %440 = vmatpush.msra.mxu0 0.0
    %441 = vmatpush.msra.mxu0 0.0
    %442 = vmatpush.msra.mxu0 0.0
    %443 = vmatpush.msra.mxu0 0.0
    %444 = vmatpush.msra.mxu0 0.0
    %445 = vmatpush.msra.mxu0 0.0
    %446 = vmatpush.msra.mxu0 0.0
    %447 = vmatpush.msra.mxu0 0.0
    %v448 = vand.u32 %v390, 4294901760
    %v449 = vsub.f32 %v390, %v448
    %v450 = vand.u32 %v449, 4294901760
    %v451 = vsub.f32 %v449, %v450
    %v452 = vand.u32 %v451, 4294901760
    %453 = vmatpush.msra.mxu0 %v452
    %v454 = vand.u32 %v395, 4294901760
    %455 = vmatmul.f32.gmra.mxu0 %v454
    %v456 = vpop.f32.mrf.mxu0
    %v457 = vadd.f32 %v423, %v456
    %v458 = vand.u32 %v397, 4294901760
    %459 = vmatmul.f32.gmra.mxu0 %v458
    %v460 = vpop.f32.mrf.mxu0
    %v461 = vadd.f32 %v431, %v460
    %462 = vdwg.mxu0
    %463 = vmatpush.msra.mxu0 0.0
    %464 = vmatpush.msra.mxu0 0.0
    %465 = vmatpush.msra.mxu0 0.0
    %466 = vmatpush.msra.mxu0 0.0
    %467 = vmatpush.msra.mxu0 0.0
    %468 = vmatpush.msra.mxu0 0.0
    %469 = vmatpush.msra.mxu0 0.0
    %470 = vmatpush.msra.mxu0 0.0
    %471 = vmatpush.msra.mxu0 0.0
    %472 = vmatpush.msra.mxu0 0.0
    %473 = vmatpush.msra.mxu0 0.0
    %474 = vmatpush.msra.mxu0 0.0
    %475 = vmatpush.msra.mxu0 0.0
    %476 = vmatpush.msra.mxu0 0.0
    %477 = vmatpush.msra.mxu0 0.0
    %v478 = vand.u32 %v390, 4294901760
    %v479 = vsub.f32 %v390, %v478
    %480 = vmatpush.msra.mxu0 %v479
    %v481 = vand.u32 %v395, 4294901760
    %v482 = vsub.f32 %v395, %v481
    %483 = vmatmul.f32.gmra.mxu0 %v482
    %v484 = vpop.f32.mrf.mxu0
    %v485 = vadd.f32 %v457, %v484
    %v486 = vand.u32 %v397, 4294901760
    %v487 = vsub.f32 %v397, %v486
    %488 = vmatmul.f32.gmra.mxu0 %v487
    %v489 = vpop.f32.mrf.mxu0
    %v490 = vadd.f32 %v461, %v489
    %491 = vdwg.mxu0
    %492 = vmatpush.msra.mxu0 0.0
    %493 = vmatpush.msra.mxu0 0.0
    %494 = vmatpush.msra.mxu0 0.0
    %495 = vmatpush.msra.mxu0 0.0
    %496 = vmatpush.msra.mxu0 0.0
    %497 = vmatpush.msra.mxu0 0.0
    %498 = vmatpush.msra.mxu0 0.0
    %499 = vmatpush.msra.mxu0 0.0
    %500 = vmatpush.msra.mxu0 0.0
    %501 = vmatpush.msra.mxu0 0.0
    %502 = vmatpush.msra.mxu0 0.0
    %503 = vmatpush.msra.mxu0 0.0
    %504 = vmatpush.msra.mxu0 0.0
    %505 = vmatpush.msra.mxu0 0.0
    %506 = vmatpush.msra.mxu0 0.0
    %v507 = vand.u32 %v390, 4294901760
    %508 = vmatpush.msra.mxu0 %v507
    %v509 = vand.u32 %v395, 4294901760
    %v510 = vsub.f32 %v395, %v509
    %v511 = vand.u32 %v510, 4294901760
    %512 = vmatmul.f32.gmra.mxu0 %v511
    %v513 = vpop.f32.mrf.mxu0
    %v514 = vadd.f32 %v485, %v513
    %v515 = vand.u32 %v397, 4294901760
    %v516 = vsub.f32 %v397, %v515
    %v517 = vand.u32 %v516, 4294901760
    %518 = vmatmul.f32.gmra.mxu0 %v517
    %v519 = vpop.f32.mrf.mxu0
    %v520 = vadd.f32 %v490, %v519
    %521 = vdwg.mxu0
    %522 = vmatpush.msra.mxu0 0.0
    %523 = vmatpush.msra.mxu0 0.0
    %524 = vmatpush.msra.mxu0 0.0
    %525 = vmatpush.msra.mxu0 0.0
    %526 = vmatpush.msra.mxu0 0.0
    %527 = vmatpush.msra.mxu0 0.0
    %528 = vmatpush.msra.mxu0 0.0
    %529 = vmatpush.msra.mxu0 0.0
    %530 = vmatpush.msra.mxu0 0.0
    %531 = vmatpush.msra.mxu0 0.0
    %532 = vmatpush.msra.mxu0 0.0
    %533 = vmatpush.msra.mxu0 0.0
    %534 = vmatpush.msra.mxu0 0.0
    %535 = vmatpush.msra.mxu0 0.0
    %536 = vmatpush.msra.mxu0 0.0
    %v537 = vand.u32 %v390, 4294901760
    %v538 = vsub.f32 %v390, %v537
    %v539 = vand.u32 %v538, 4294901760
    %540 = vmatpush.msra.mxu0 %v539
    %v541 = vand.u32 %v395, 4294901760
    %542 = vmatmul.f32.gmra.mxu0 %v541
    %v543 = vpop.f32.mrf.mxu0
    %v544 = vadd.f32 %v514, %v543
    %v545 = vand.u32 %v397, 4294901760
    %546 = vmatmul.f32.gmra.mxu0 %v545
    %v547 = vpop.f32.mrf.mxu0
    %v548 = vadd.f32 %v520, %v547
    %549 = vdwg.mxu0
    %550 = vmatpush.msra.mxu0 0.0
    %551 = vmatpush.msra.mxu0 0.0
    %552 = vmatpush.msra.mxu0 0.0
    %553 = vmatpush.msra.mxu0 0.0
    %554 = vmatpush.msra.mxu0 0.0
    %555 = vmatpush.msra.mxu0 0.0
    %556 = vmatpush.msra.mxu0 0.0
    %557 = vmatpush.msra.mxu0 0.0
    %558 = vmatpush.msra.mxu0 0.0
    %559 = vmatpush.msra.mxu0 0.0
    %560 = vmatpush.msra.mxu0 0.0
    %561 = vmatpush.msra.mxu0 0.0
    %562 = vmatpush.msra.mxu0 0.0
    %563 = vmatpush.msra.mxu0 0.0
    %564 = vmatpush.msra.mxu0 0.0
    %v565 = vand.u32 %v390, 4294901760
    %566 = vmatpush.msra.mxu0 %v565
    %v567 = vand.u32 %v395, 4294901760
    %568 = vmatmul.f32.gmra.mxu0 %v567
    %v569 = vpop.f32.mrf.mxu0
    %v570 = vadd.f32 %v544, %v569
    %v571 = vand.u32 %v397, 4294901760
    %572 = vmatmul.f32.gmra.mxu0 %v571
    %v573 = vpop.f32.mrf.mxu0
    %v574 = vadd.f32 %v548, %v573
    %575 = vdwg.mxu0
    %s576 = scalar_lea.vmem %s1, 24
    %v577 = vld [vmem:[%s576] sm:$0xff]
    %578 = vrot.lane.b32.xlu0 %v15, 104
    %v579 = vpop.permute.xlu0 %578
    %580 = vrot.lane.b32.xlu0 %v16, 104
    %v581 = vpop.permute.xlu0 %580
    %v582 = vsel %vm18, %v579, 0
    %v584 = vsel %vm18, %v581, 0
    %586 = vmatpush.msra.mxu0 0.0
    %587 = vmatpush.msra.mxu0 0.0
    %588 = vmatpush.msra.mxu0 0.0
    %589 = vmatpush.msra.mxu0 0.0
    %590 = vmatpush.msra.mxu0 0.0
    %591 = vmatpush.msra.mxu0 0.0
    %592 = vmatpush.msra.mxu0 0.0
    %593 = vmatpush.msra.mxu0 0.0
    %594 = vmatpush.msra.mxu0 0.0
    %595 = vmatpush.msra.mxu0 0.0
    %596 = vmatpush.msra.mxu0 0.0
    %597 = vmatpush.msra.mxu0 0.0
    %598 = vmatpush.msra.mxu0 0.0
    %599 = vmatpush.msra.mxu0 0.0
    %600 = vmatpush.msra.mxu0 0.0
    %v601 = vand.u32 %v577, 4294901760
    %602 = vmatpush.msra.mxu0 %v601
    %v603 = vand.u32 %v582, 4294901760
    %v604 = vsub.f32 %v582, %v603
    %v605 = vand.u32 %v604, 4294901760
    %v606 = vsub.f32 %v604, %v605
    %v607 = vand.u32 %v606, 4294901760
    %608 = vmatmul.f32.gmra.mxu0 %v607
    %v609 = vpop.f32.mrf.mxu0
    %v610 = vadd.f32 0.0, %v609
    %v611 = vand.u32 %v584, 4294901760
    %v612 = vsub.f32 %v584, %v611
    %v613 = vand.u32 %v612, 4294901760
    %v614 = vsub.f32 %v612, %v613
    %v615 = vand.u32 %v614, 4294901760
    %616 = vmatmul.f32.gmra.mxu0 %v615
    %v617 = vpop.f32.mrf.mxu0
    %v618 = vadd.f32 0.0, %v617
    %619 = vdwg.mxu0
    %620 = vmatpush.msra.mxu0 0.0
    %621 = vmatpush.msra.mxu0 0.0
    %622 = vmatpush.msra.mxu0 0.0
    %623 = vmatpush.msra.mxu0 0.0
    %624 = vmatpush.msra.mxu0 0.0
    %625 = vmatpush.msra.mxu0 0.0
    %626 = vmatpush.msra.mxu0 0.0
    %627 = vmatpush.msra.mxu0 0.0
    %628 = vmatpush.msra.mxu0 0.0
    %629 = vmatpush.msra.mxu0 0.0
    %630 = vmatpush.msra.mxu0 0.0
    %631 = vmatpush.msra.mxu0 0.0
    %632 = vmatpush.msra.mxu0 0.0
    %633 = vmatpush.msra.mxu0 0.0
    %634 = vmatpush.msra.mxu0 0.0
    %v635 = vand.u32 %v577, 4294901760
    %v636 = vsub.f32 %v577, %v635
    %v637 = vand.u32 %v636, 4294901760
    %v638 = vsub.f32 %v636, %v637
    %v639 = vand.u32 %v638, 4294901760
    %640 = vmatpush.msra.mxu0 %v639
    %v641 = vand.u32 %v582, 4294901760
    %642 = vmatmul.f32.gmra.mxu0 %v641
    %v643 = vpop.f32.mrf.mxu0
    %v644 = vadd.f32 %v610, %v643
    %v645 = vand.u32 %v584, 4294901760
    %646 = vmatmul.f32.gmra.mxu0 %v645
    %v647 = vpop.f32.mrf.mxu0
    %v648 = vadd.f32 %v618, %v647
    %649 = vdwg.mxu0
    %650 = vmatpush.msra.mxu0 0.0
    %651 = vmatpush.msra.mxu0 0.0
    %652 = vmatpush.msra.mxu0 0.0
    %653 = vmatpush.msra.mxu0 0.0
    %654 = vmatpush.msra.mxu0 0.0
    %655 = vmatpush.msra.mxu0 0.0
    %656 = vmatpush.msra.mxu0 0.0
    %657 = vmatpush.msra.mxu0 0.0
    %658 = vmatpush.msra.mxu0 0.0
    %659 = vmatpush.msra.mxu0 0.0
    %660 = vmatpush.msra.mxu0 0.0
    %661 = vmatpush.msra.mxu0 0.0
    %662 = vmatpush.msra.mxu0 0.0
    %663 = vmatpush.msra.mxu0 0.0
    %664 = vmatpush.msra.mxu0 0.0
    %v665 = vand.u32 %v577, 4294901760
    %v666 = vsub.f32 %v577, %v665
    %667 = vmatpush.msra.mxu0 %v666
    %v668 = vand.u32 %v582, 4294901760
    %v669 = vsub.f32 %v582, %v668
    %670 = vmatmul.f32.gmra.mxu0 %v669
    %v671 = vpop.f32.mrf.mxu0
    %v672 = vadd.f32 %v644, %v671
    %v673 = vand.u32 %v584, 4294901760
    %v674 = vsub.f32 %v584, %v673
    %675 = vmatmul.f32.gmra.mxu0 %v674
    %v676 = vpop.f32.mrf.mxu0
    %v677 = vadd.f32 %v648, %v676
    %678 = vdwg.mxu0
    %679 = vmatpush.msra.mxu0 0.0
    %680 = vmatpush.msra.mxu0 0.0
    %681 = vmatpush.msra.mxu0 0.0
    %682 = vmatpush.msra.mxu0 0.0
    %683 = vmatpush.msra.mxu0 0.0
    %684 = vmatpush.msra.mxu0 0.0
    %685 = vmatpush.msra.mxu0 0.0
    %686 = vmatpush.msra.mxu0 0.0
    %687 = vmatpush.msra.mxu0 0.0
    %688 = vmatpush.msra.mxu0 0.0
    %689 = vmatpush.msra.mxu0 0.0
    %690 = vmatpush.msra.mxu0 0.0
    %691 = vmatpush.msra.mxu0 0.0
    %692 = vmatpush.msra.mxu0 0.0
    %693 = vmatpush.msra.mxu0 0.0
    %v694 = vand.u32 %v577, 4294901760
    %695 = vmatpush.msra.mxu0 %v694
    %v696 = vand.u32 %v582, 4294901760
    %v697 = vsub.f32 %v582, %v696
    %v698 = vand.u32 %v697, 4294901760
    %699 = vmatmul.f32.gmra.mxu0 %v698
    %v700 = vpop.f32.mrf.mxu0
    %v701 = vadd.f32 %v672, %v700
    %v702 = vand.u32 %v584, 4294901760
    %v703 = vsub.f32 %v584, %v702
    %v704 = vand.u32 %v703, 4294901760
    %705 = vmatmul.f32.gmra.mxu0 %v704
    %v706 = vpop.f32.mrf.mxu0
    %v707 = vadd.f32 %v677, %v706
    %708 = vdwg.mxu0
    %709 = vmatpush.msra.mxu0 0.0
    %710 = vmatpush.msra.mxu0 0.0
    %711 = vmatpush.msra.mxu0 0.0
    %712 = vmatpush.msra.mxu0 0.0
    %713 = vmatpush.msra.mxu0 0.0
    %714 = vmatpush.msra.mxu0 0.0
    %715 = vmatpush.msra.mxu0 0.0
    %716 = vmatpush.msra.mxu0 0.0
    %717 = vmatpush.msra.mxu0 0.0
    %718 = vmatpush.msra.mxu0 0.0
    %719 = vmatpush.msra.mxu0 0.0
    %720 = vmatpush.msra.mxu0 0.0
    %721 = vmatpush.msra.mxu0 0.0
    %722 = vmatpush.msra.mxu0 0.0
    %723 = vmatpush.msra.mxu0 0.0
    %v724 = vand.u32 %v577, 4294901760
    %v725 = vsub.f32 %v577, %v724
    %v726 = vand.u32 %v725, 4294901760
    %727 = vmatpush.msra.mxu0 %v726
    %v728 = vand.u32 %v582, 4294901760
    %729 = vmatmul.f32.gmra.mxu0 %v728
    %v730 = vpop.f32.mrf.mxu0
    %v731 = vadd.f32 %v701, %v730
    %v732 = vand.u32 %v584, 4294901760
    %733 = vmatmul.f32.gmra.mxu0 %v732
    %v734 = vpop.f32.mrf.mxu0
    %v735 = vadd.f32 %v707, %v734
    %736 = vdwg.mxu0
    %737 = vmatpush.msra.mxu0 0.0
    %738 = vmatpush.msra.mxu0 0.0
    %739 = vmatpush.msra.mxu0 0.0
    %740 = vmatpush.msra.mxu0 0.0
    %741 = vmatpush.msra.mxu0 0.0
    %742 = vmatpush.msra.mxu0 0.0
    %743 = vmatpush.msra.mxu0 0.0
    %744 = vmatpush.msra.mxu0 0.0
    %745 = vmatpush.msra.mxu0 0.0
    %746 = vmatpush.msra.mxu0 0.0
    %747 = vmatpush.msra.mxu0 0.0
    %748 = vmatpush.msra.mxu0 0.0
    %749 = vmatpush.msra.mxu0 0.0
    %750 = vmatpush.msra.mxu0 0.0
    %751 = vmatpush.msra.mxu0 0.0
    %v752 = vand.u32 %v577, 4294901760
    %753 = vmatpush.msra.mxu0 %v752
    %v754 = vand.u32 %v582, 4294901760
    %755 = vmatmul.f32.gmra.mxu0 %v754
    %v756 = vpop.f32.mrf.mxu0
    %v757 = vadd.f32 %v731, %v756
    %v758 = vand.u32 %v584, 4294901760
    %759 = vmatmul.f32.gmra.mxu0 %v758
    %v760 = vpop.f32.mrf.mxu0
    %v761 = vadd.f32 %v735, %v760
    %762 = vdwg.mxu0
    %765 = vrot.lane.b32.xlu0 %v383, 4
    %v766 = vpop.permute.xlu0 %765
    %767 = vrot.lane.b32.xlu0 %v387, 4
    %v768 = vpop.permute.xlu0 %767
    %773 = vrot.lane.b32.xlu0 %v570, 8
    %v774 = vpop.permute.xlu0 %773
    %775 = vrot.lane.b32.xlu0 %v574, 8
    %v776 = vpop.permute.xlu0 %775
    %781 = vrot.lane.b32.xlu0 %v757, 12
    %v782 = vpop.permute.xlu0 %781
    %783 = vrot.lane.b32.xlu0 %v761, 12
    %v784 = vpop.permute.xlu0 %783
    %vm787 = vcmask 31744
    %v788 = vsel %vm787, %v196, %v766
    %v789 = vsel %vm787, %v200, %v768
    %v790 = vsel %vm18, %v788, %v774
    %v791 = vsel %vm18, %v789, %v776
    %vm792 = vcmask 97280
    %v793 = vsel %vm792, %v790, %v782
    %v794 = vsel %vm792, %v791, %v784
    %v795 = vld [vmem:[%s2] sm:$0x1]
    %v797 = vperm.slane %v795, 0
    %v799 = vadd.f32 %v793, %v797
    %v800 = vadd.f32 %v794, %v797
    %vm801 = vcmask 130048
    %802 = vst.msk [vmem:[#allocation2] sm:$0xff] %vm801, %v799
    %803 = vst.msk [vmem:[#allocation2 + $0x8] sm:$0xff] %vm801, %v800
    // Predicated region
    $region14: #{tpu_custom_call.1} parent=1 // pred_check
      _
    $region15: #{tpu_custom_call.1} parent=1 // pred_check_branch
      %805 = sbr.rel (0) target = $region17
    $region16: #{tpu_custom_call.1} parent=1 // pred_region
      %807 = vsyncadd [#allocation3], 0
      %s808 = sshll.u32 [#allocation2], 4
      %s809 = int_to_ptr.vmem [resolvable:$true] %s808
      %s810 = sshll.u32 %s3, 4
      %s811 = int_to_ptr.hbm [resolvable:$true] %s810
      %816 = dma.vmem_to_hbm [thread:$0]  %s809, 256, %s811, [#allocation3], 128, 128, 8
    $region17: #{tpu_custom_call.1} parent=1 // pred_fallthru
      _
    // Predicated region
    $region18: #{tpu_custom_call.1} parent=1 // pred_check
      _
    $region19: #{tpu_custom_call.1} parent=1 // pred_check_branch
      %818 = sbr.rel (0) target = $region21
    $region20: #{tpu_custom_call.1} parent=1 // pred_region
      %820 = dma.done [#allocation3], 256
    $region21: #{tpu_custom_call.1} parent=1 // pred_fallthru
      _
    %821 = vsyncpa [#allocation3], 1

</llo_original>
